<compile_context>
chip_gen: v7x
topology: tpu7x:2x2x1
jax: 0.10.0
libtpu: 0.0.40
codegen_flags: <defaults>
</compile_context>

<pallas_src>
import functools

import jax
import jax.numpy as jnp
from jax.experimental import pallas as pl
from jax.experimental.pallas import tpu as pltpu  # noqa: F401  (kept for parity with other kernels)


def _se_kernel(x_ref, w_ref, o_ref, *, inv_hw):
    # x_ref: (B, C, HWp)   w_ref: (C, 2*hid) = [fc1.weight.T | fc2.weight]   o_ref: (B, C, HWp)
    x = x_ref[...]                                    # (B, C, HWp), activation dtype
    hid = w_ref.shape[1] // 2
    w1 = w_ref[:, :hid].astype(jnp.float32)           # (C, hid)  == fc1.weight.T
    w2 = w_ref[:, hid:].astype(jnp.float32)            # (C, hid)  == fc2.weight

    # Squeeze: global average pool over spatial (lane reduction), f32 accumulate.
    # Zero-padded lanes (if HW was padded to a multiple of 128) add nothing to
    # the sum; inv_hw uses the true HW, so the mean is exact.
    pooled = jnp.sum(x.astype(jnp.float32), axis=-1, keepdims=True) * inv_hw   # (B, C, 1)

    # Excitation (~100 MACs total) kept on the VPU/XLU -- far too small for the MXU.
    #   h[b, j] = relu( sum_c pooled[b, c] * w1[c, j] )
    #   s[b, c] = sigmoid( sum_j h[b, j] * w2[c, j] )
    h = jnp.sum(pooled * w1[None], axis=1, keepdims=True)                       # (B, 1, hid)
    h = jnp.maximum(h, 0.0)
    s = jax.nn.sigmoid(jnp.sum(h * w2[None], axis=-1, keepdims=True))           # (B, C, 1)

    # Scale: per-channel gate broadcast across all HW lanes, in activation dtype.
    o_ref[...] = (x * s.astype(x.dtype)).astype(o_ref.dtype)


def se_block(x, w1, w2):
    """Squeeze-and-Excitation forward.

    x : (B, C, H, W)   NCHW, matching the PyTorch module.
    w1: (C, hid)  == fc1.weight.T  (fc1 = nn.Linear(C, hid, bias=False))
    w2: (C, hid)  == fc2.weight    (fc2 = nn.Linear(hid, C, bias=False))
    Returns (B, C, H, W).
    """
    B, C, H, W = x.shape
    HW = H * W
    hid = w1.shape[1]

    # Lane-dense spatial axis: pad HW up to a multiple of 128 so all stores are
    # unmasked full-width vst (biggest measured single lever; HW=256 is already
    # dense, so this is a no-op for the test shape).
    HW_pad = ((HW + 127) // 128) * 128

    x3 = x.reshape(B, C, HW)                          # free reshape, no data movement
    if HW_pad != HW:
        x3 = jnp.pad(x3, ((0, 0), (0, 0), (0, HW_pad - HW)))

    # Pack both tiny weight matrices into one operand: one DMA, one VMEM tile.
    w_packed = jnp.concatenate([w1, w2], axis=-1)     # (C, 2*hid)

    out = pl.pallas_call(
        functools.partial(_se_kernel, inv_hw=1.0 / HW),
        out_shape=jax.ShapeDtypeStruct((B, C, HW_pad), x.dtype),
        in_specs=[
            pl.BlockSpec((B, C, HW_pad), lambda: (0, 0, 0)),
            pl.BlockSpec((C, 2 * hid), lambda: (0, 0)),
        ],
        out_specs=pl.BlockSpec((B, C, HW_pad), lambda: (0, 0, 0)),
    )(x3, w_packed)

    if HW_pad != HW:
        out = out[:, :, :HW]
    return out.reshape(B, C, H, W)


def _reference(x, w1, w2):
    # Pure-JAX reference mirroring the PyTorch forward (NCHW, bias=False).
    pooled = jnp.mean(x, axis=(2, 3))                 # (B, C)
    h = jnp.maximum(pooled @ w1, 0.0)                 # (B, hid)   == relu(fc1(pooled))
    s = jax.nn.sigmoid(h @ w2.T)                      # (B, C)     == sigmoid(fc2(h))
    return x * s[:, :, None, None]


if __name__ == "__main__":
    # Module config: channels=32, reduction=16 -> hidden=2
    B, C, H, W = 2, 32, 16, 16
    reduction = 16
    hid = C // reduction

    key = jax.random.PRNGKey(0)
    kx, k1, k2 = jax.random.split(key, 3)

    x = jax.random.normal(kx, (B, C, H, W), dtype=jnp.float32)
    # Kernel-friendly weight layouts (both channels-major, shape (C, hid)):
    #   w1 plays the role of fc1.weight.T, w2 the role of fc2.weight.
    w1 = jax.random.normal(k1, (C, hid), dtype=jnp.float32) / jnp.sqrt(C)
    w2 = jax.random.normal(k2, (C, hid), dtype=jnp.float32) / jnp.sqrt(hid)

    out = se_block(x, w1, w2)
    jax.block_until_ready(out)

    ref = _reference(x, w1, w2)
    assert out.shape == (B, C, H, W)
    assert jnp.allclose(out, ref, atol=1e-5, rtol=1e-5), "mismatch vs reference"

    print("KERNEL_OK")
</pallas_src>

<mosaic_0001>
module attributes {stable_mosaic.version = 11 : i64} {
  func.func @_se_kernel(%arg0: memref<2x32x256xf32, #tpu.memory_space<vmem>>, %arg1: memref<32x4xf32, #tpu.memory_space<vmem>>, %arg2: memref<2x32x256xf32, #tpu.memory_space<vmem>>) attributes {dimension_semantics = [], scalar_prefetch = 0 : i64, scratch_operands = 0 : i64, tpu.core_type = #tpu.core_type<tc>} {
    %c0 = arith.constant 0 : index
    %c0_0 = arith.constant 0 : index
    %c0_1 = arith.constant 0 : index
    %0 = vector.load %arg0[%c0, %c0_0, %c0_1] : memref<2x32x256xf32, #tpu.memory_space<vmem>>, vector<2x32x256xf32>
    %c0_2 = arith.constant 0 : index
    %c0_3 = arith.constant 0 : index
    %1 = vector.load %arg1[%c0_2, %c0_3] : memref<32x4xf32, #tpu.memory_space<vmem>>, vector<32x2xf32>
    %c0_4 = arith.constant 0 : index
    %c2 = arith.constant 2 : index
    %2 = vector.load %arg1[%c0_4, %c2] : memref<32x4xf32, #tpu.memory_space<vmem>>, vector<32x2xf32>
    %cst = arith.constant dense<0.000000e+00> : vector<2x32xf32>
    %3 = vector.multi_reduction <add>, %0, %cst [2] : vector<2x32x256xf32> to vector<2x32xf32>
    %4 = vector.shape_cast %3 : vector<2x32xf32> to vector<2x32x1xf32>
    %cst_5 = arith.constant 3.906250e-03 : f32
    %5 = vector.broadcast %cst_5 : f32 to vector<2x32x1xf32>
    %6 = arith.mulf %4, %5 : vector<2x32x1xf32>
    %7 = vector.shape_cast %1 : vector<32x2xf32> to vector<1x32x2xf32>
    %8 = vector.broadcast %6 : vector<2x32x1xf32> to vector<2x32x2xf32>
    %9 = vector.broadcast %7 : vector<1x32x2xf32> to vector<2x32x2xf32>
    %10 = arith.mulf %8, %9 : vector<2x32x2xf32>
    %cst_6 = arith.constant dense<0.000000e+00> : vector<2x2xf32>
    %11 = vector.multi_reduction <add>, %10, %cst_6 [1] : vector<2x32x2xf32> to vector<2x2xf32>
    %12 = vector.shape_cast %11 : vector<2x2xf32> to vector<2x1x2xf32>
    %cst_7 = arith.constant 0.000000e+00 : f32
    %13 = vector.broadcast %cst_7 : f32 to vector<2x1x2xf32>
    %14 = arith.maximumf %12, %13 : vector<2x1x2xf32>
    %15 = vector.shape_cast %2 : vector<32x2xf32> to vector<1x32x2xf32>
    %16 = vector.broadcast %14 : vector<2x1x2xf32> to vector<2x32x2xf32>
    %17 = vector.broadcast %15 : vector<1x32x2xf32> to vector<2x32x2xf32>
    %18 = arith.mulf %16, %17 : vector<2x32x2xf32>
    %cst_8 = arith.constant dense<0.000000e+00> : vector<2x32xf32>
    %19 = vector.multi_reduction <add>, %18, %cst_8 [2] : vector<2x32x2xf32> to vector<2x32xf32>
    %20 = vector.shape_cast %19 : vector<2x32xf32> to vector<2x32x1xf32>
    %21 = arith.negf %20 : vector<2x32x1xf32>
    %22 = math.exp %21 : vector<2x32x1xf32>
    %cst_9 = arith.constant 1.000000e+00 : f32
    %23 = vector.broadcast %cst_9 : f32 to vector<2x32x1xf32>
    %24 = arith.addf %23, %22 : vector<2x32x1xf32>
    %25 = arith.divf %23, %24 : vector<2x32x1xf32>
    %26 = vector.broadcast %25 : vector<2x32x1xf32> to vector<2x32x256xf32>
    %27 = arith.mulf %0, %26 : vector<2x32x256xf32>
    %c0_10 = arith.constant 0 : index
    %c0_11 = arith.constant 0 : index
    %c0_12 = arith.constant 0 : index
    %28 = vector.load %arg2[%c0_10, %c0_11, %c0_12] : memref<2x32x256xf32, #tpu.memory_space<vmem>>, vector<2x32x256xf32>
    tpu.vector_store %arg2[%c0_10, %c0_11, %c0_12], %27 {strides = array<i32>} : memref<2x32x256xf32, #tpu.memory_space<vmem>>, vector<2x32x256xf32>,
    return
  }
}

</mosaic_0001>

<llo_original>
// kernel: tpu_custom_call.1
$region0: #{tpu_custom_call.1}
  #allocation0 [shape = 'u32[]', space=smem, size = 0x4, offset = 0x4, fixed_abs, tag = 'smem constant byte address 0x4 - core index']
  #allocation1 [shape = 'u32[144,128]{1,0:T(1,128)}', space=vmem, size = 0x12000, scoped, tag = 'internal scratch']
  %s0 = inlined_call_operand.hbm [shape: f32[2,32,256], index: 0, kind: input, shape index: {}]
  %s1 = inlined_call_operand.vmem [shape: f32[32,4], index: 1, kind: input, shape index: {}]
  %s2 = inlined_call_operand.hbm [shape: f32[2,32,256], index: 2, kind: output, shape index: {}]
  %s3 = sld [smem:[#allocation0]]
  $region22: #{tpu_custom_call.1} parent=0
    _
  %s5 = ssub.s32 1, %s3
  %s6 = scalar_select 0, %s5, %s3
  $region1: #{tpu_custom_call.1} parent=0
    #allocation2 [shape = 'u8[65536]{0}', space=vmem, size = 0x10000, scoped, tag = 'input window, operand 0, single buffered']
    #allocation3 [shape = 's32[1]{0}', space=sflag, size = 0x4, scoped, tag = 'scoped memory for tpu_custom_call.1']
    #allocation4 [shape = 's32[1]{0}', space=sflag, size = 0x4, scoped, tag = 'scoped memory for tpu_custom_call.1']
    #allocation5 [shape = 'u8[65536]{0}', space=vmem, size = 0x10000, scoped, tag = 'output window, operand 0, single buffered']
    %7 = vsyncpa [#allocation3], 0
    %8 = vsyncpa [#allocation4], 0
    // Predicated region
    $region2: #{tpu_custom_call.1} parent=1 // pred_check
      _
    $region3: #{tpu_custom_call.1} parent=1 // pred_check_branch
      %10 = sbr.rel (0) target = $region5
    $region4: #{tpu_custom_call.1} parent=1 // pred_region
      %s12 = ssub.s32 2048, 2048
      %13 = vsyncadd [#allocation3], %s12
      %s14 = sshll.u32 [#allocation2], 4
      %s15 = int_to_ptr.vmem [resolvable:$true] %s14
      %20 = dma.hbm_to_vmem [thread:$0]  %s0, 2048, %s15, [#allocation3], 256, 256, 16
    $region5: #{tpu_custom_call.1} parent=1 // pred_fallthru
      _
    // Predicated region
    $region6: #{tpu_custom_call.1} parent=1 // pred_check
      _
    $region7: #{tpu_custom_call.1} parent=1 // pred_check_branch
      %22 = sbr.rel (0) target = $region9
    $region8: #{tpu_custom_call.1} parent=1 // pred_region
      _
    $region9: #{tpu_custom_call.1} parent=1 // pred_fallthru
      _
    // Predicated region
    $region10: #{tpu_custom_call.1} parent=1 // pred_check
      _
    $region11: #{tpu_custom_call.1} parent=1 // pred_check_branch
      %24 = sbr.rel (0) target = $region13
    $region12: #{tpu_custom_call.1} parent=1 // pred_region
      %25 = dma.done [#allocation3], 2048
    $region13: #{tpu_custom_call.1} parent=1 // pred_fallthru
      _
    %v26 = vld [vmem:[#allocation2] sm:$0xff]
    %v27 = vld [vmem:[#allocation2 + $0x8] sm:$0xff]
    %v28 = vld [vmem:[#allocation2 + $0x10] sm:$0xff]
    %v29 = vld [vmem:[#allocation2 + $0x18] sm:$0xff]
    %v30 = vld [vmem:[#allocation2 + $0x20] sm:$0xff]
    %v31 = vld [vmem:[#allocation2 + $0x28] sm:$0xff]
    %v32 = vld [vmem:[#allocation2 + $0x30] sm:$0xff]
    %v33 = vld [vmem:[#allocation2 + $0x38] sm:$0xff]
    %v34 = vld [vmem:[#allocation2 + $0x40] sm:$0xff]
    %v35 = vld [vmem:[#allocation2 + $0x48] sm:$0xff]
    %v36 = vld [vmem:[#allocation2 + $0x50] sm:$0xff]
    %v37 = vld [vmem:[#allocation2 + $0x58] sm:$0xff]
    %v38 = vld [vmem:[#allocation2 + $0x60] sm:$0xff]
    %v39 = vld [vmem:[#allocation2 + $0x68] sm:$0xff]
    %v40 = vld [vmem:[#allocation2 + $0x70] sm:$0xff]
    %v41 = vld [vmem:[#allocation2 + $0x78] sm:$0xff]
    %v42 = vld [vmem:[%s1] sm:$0xff]
    %v43 = vld [vmem:[%s1 + $0x8] sm:$0xff]
    %v44 = vld [vmem:[%s1 + $0x10] sm:$0xff]
    %v45 = vld [vmem:[%s1 + $0x18] sm:$0xff]
    %v46 = vadd.f32 %v26, %v27
    %47 = vadd.xlane.f32.xlu0 %v46
    %v48 = vpop.xlane.xlu0 %47
    %v49 = vadd.f32 %v28, %v29
    %50 = vadd.xlane.f32.xlu0 %v49
    %v51 = vpop.xlane.xlu0 %50
    %v52 = vadd.f32 %v30, %v31
    %53 = vadd.xlane.f32.xlu0 %v52
    %v54 = vpop.xlane.xlu0 %53
    %v55 = vadd.f32 %v32, %v33
    %56 = vadd.xlane.f32.xlu0 %v55
    %v57 = vpop.xlane.xlu0 %56
    %v58 = vadd.f32 %v34, %v35
    %59 = vadd.xlane.f32.xlu0 %v58
    %v60 = vpop.xlane.xlu0 %59
    %v61 = vadd.f32 %v36, %v37
    %62 = vadd.xlane.f32.xlu0 %v61
    %v63 = vpop.xlane.xlu0 %62
    %v64 = vadd.f32 %v38, %v39
    %65 = vadd.xlane.f32.xlu0 %v64
    %v66 = vpop.xlane.xlu0 %65
    %v67 = vadd.f32 %v40, %v41
    %68 = vadd.xlane.f32.xlu0 %v67
    %v69 = vpop.xlane.xlu0 %68
    %v70 = vmul.f32 %v48, 0.00390625
    %v71 = vmul.f32 %v51, 0.00390625
    %v72 = vmul.f32 %v54, 0.00390625
    %v73 = vmul.f32 %v57, 0.00390625
    %v74 = vmul.f32 %v60, 0.00390625
    %v75 = vmul.f32 %v63, 0.00390625
    %v76 = vmul.f32 %v66, 0.00390625
    %v77 = vmul.f32 %v69, 0.00390625
    %v78 = vmul.f32 %v70, %v42
    %v79 = vmul.f32 %v71, %v43
    %v80 = vmul.f32 %v72, %v44
    %v81 = vmul.f32 %v73, %v45
    %v82 = vmul.f32 %v74, %v42
    %v83 = vmul.f32 %v75, %v43
    %v84 = vmul.f32 %v76, %v44
    %v85 = vmul.f32 %v77, %v45
    %vm86 = vcmask 15360
    %v87 = vsel %vm86, %v78, 0.0
    %v88 = vsel %vm86, %v79, 0.0
    %v89 = vadd.f32 %v87, %v88
    %v90 = vsel %vm86, %v80, 0.0
    %v91 = vadd.f32 %v89, %v90
    %v92 = vsel %vm86, %v81, 0.0
    %v93 = vadd.f32 %v91, %v92
    %v94 = vrot.slane %v93, 4
    %v95 = vadd.f32 %v93, %v94
    %v96 = vrot.slane %v95, 2
    %v97 = vadd.f32 %v95, %v96
    %v98 = vrot.slane %v97, 1
    %v99 = vadd.f32 %v97, %v98
    %v100 = vsel %vm86, %v82, 0.0
    %v101 = vsel %vm86, %v83, 0.0
    %v102 = vadd.f32 %v100, %v101
    %v103 = vsel %vm86, %v84, 0.0
    %v104 = vadd.f32 %v102, %v103
    %v105 = vsel %vm86, %v85, 0.0
    %v106 = vadd.f32 %v104, %v105
    %v107 = vrot.slane %v106, 4
    %v108 = vadd.f32 %v106, %v107
    %v109 = vrot.slane %v108, 2
    %v110 = vadd.f32 %v108, %v109
    %v111 = vrot.slane %v110, 1
    %v112 = vadd.f32 %v110, %v111
    %v113 = vmax.f32 %v99, 0.0
    %v114 = vmax.f32 %v112, 0.0
    %119 = vrot.lane.b32.xlu0 %v42, 126
    %v120 = vpop.permute.xlu0 %119
    %121 = vrot.lane.b32.xlu0 %v43, 126
    %v122 = vpop.permute.xlu0 %121
    %123 = vrot.lane.b32.xlu0 %v44, 126
    %v124 = vpop.permute.xlu0 %123
    %125 = vrot.lane.b32.xlu0 %v45, 126
    %v126 = vpop.permute.xlu0 %125
    %v131 = vmul.f32 %v113, %v120
    %v132 = vmul.f32 %v113, %v122
    %v133 = vmul.f32 %v113, %v124
    %v134 = vmul.f32 %v113, %v126
    %v135 = vmul.f32 %v114, %v120
    %v136 = vmul.f32 %v114, %v122
    %v137 = vmul.f32 %v114, %v124
    %v138 = vmul.f32 %v114, %v126
    %v139 = vsel %vm86, %v131, 0.0
    %140 = vadd.xlane.f32.xlu0 %v139
    %v141 = vpop.xlane.xlu0 %140
    %v142 = vsel %vm86, %v132, 0.0
    %143 = vadd.xlane.f32.xlu0 %v142
    %v144 = vpop.xlane.xlu0 %143
    %v145 = vsel %vm86, %v133, 0.0
    %146 = vadd.xlane.f32.xlu0 %v145
    %v147 = vpop.xlane.xlu0 %146
    %v148 = vsel %vm86, %v134, 0.0
    %149 = vadd.xlane.f32.xlu0 %v148
    %v150 = vpop.xlane.xlu0 %149
    %v151 = vsel %vm86, %v135, 0.0
    %152 = vadd.xlane.f32.xlu0 %v151
    %v153 = vpop.xlane.xlu0 %152
    %v154 = vsel %vm86, %v136, 0.0
    %155 = vadd.xlane.f32.xlu0 %v154
    %v156 = vpop.xlane.xlu0 %155
    %v157 = vsel %vm86, %v137, 0.0
    %158 = vadd.xlane.f32.xlu0 %v157
    %v159 = vpop.xlane.xlu0 %158
    %v160 = vsel %vm86, %v138, 0.0
    %161 = vadd.xlane.f32.xlu0 %v160
    %v162 = vpop.xlane.xlu0 %161
    %v163 = vxor.u32 %v141, 2147483648
    %v164 = vxor.u32 %v144, 2147483648
    %v165 = vxor.u32 %v147, 2147483648
    %v166 = vxor.u32 %v150, 2147483648
    %v167 = vxor.u32 %v153, 2147483648
    %v168 = vxor.u32 %v156, 2147483648
    %v169 = vxor.u32 %v159, 2147483648
    %v170 = vxor.u32 %v162, 2147483648
    %v171 = vmul.f32 %v163, 1.442695
    %v172 = vpow.pop %v171
    %v173 = vmul.f32 %v164, 1.442695
    %v174 = vpow.pop %v173
    %v175 = vmul.f32 %v165, 1.442695
    %v176 = vpow.pop %v175
    %v177 = vmul.f32 %v166, 1.442695
    %v178 = vpow.pop %v177
    %v179 = vmul.f32 %v167, 1.442695
    %v180 = vpow.pop %v179
    %v181 = vmul.f32 %v168, 1.442695
    %v182 = vpow.pop %v181
    %v183 = vmul.f32 %v169, 1.442695
    %v184 = vpow.pop %v183
    %v185 = vmul.f32 %v170, 1.442695
    %v186 = vpow.pop %v185
    %v187 = vadd.f32 %v172, 1.0
    %v188 = vadd.f32 %v174, 1.0
    %v189 = vadd.f32 %v176, 1.0
    %v190 = vadd.f32 %v178, 1.0
    %v191 = vadd.f32 %v180, 1.0
    %v192 = vadd.f32 %v182, 1.0
    %v193 = vadd.f32 %v184, 1.0
    %v194 = vadd.f32 %v186, 1.0
    %v195 = vrcp.pop %v187
    %v196 = vmul.f32 1.0, %v195
    %v197 = vrcp.pop %v188
    %v198 = vmul.f32 1.0, %v197
    %v199 = vrcp.pop %v189
    %v200 = vmul.f32 1.0, %v199
    %v201 = vrcp.pop %v190
    %v202 = vmul.f32 1.0, %v201
    %v203 = vrcp.pop %v191
    %v204 = vmul.f32 1.0, %v203
    %v205 = vrcp.pop %v192
    %v206 = vmul.f32 1.0, %v205
    %v207 = vrcp.pop %v193
    %v208 = vmul.f32 1.0, %v207
    %v209 = vrcp.pop %v194
    %v210 = vmul.f32 1.0, %v209
    %v211 = vmul.f32 %v26, %v196
    %v212 = vmul.f32 %v27, %v196
    %v213 = vmul.f32 %v28, %v198
    %v214 = vmul.f32 %v29, %v198
    %v215 = vmul.f32 %v30, %v200
    %v216 = vmul.f32 %v31, %v200
    %v217 = vmul.f32 %v32, %v202
    %v218 = vmul.f32 %v33, %v202
    %v219 = vmul.f32 %v34, %v204
    %v220 = vmul.f32 %v35, %v204
    %v221 = vmul.f32 %v36, %v206
    %v222 = vmul.f32 %v37, %v206
    %v223 = vmul.f32 %v38, %v208
    %v224 = vmul.f32 %v39, %v208
    %v225 = vmul.f32 %v40, %v210
    %v226 = vmul.f32 %v41, %v210
    %227 = vst [vmem:[#allocation5] sm:$0xff] %v211
    %228 = vst [vmem:[#allocation5 + $0x8] sm:$0xff] %v212
    %229 = vst [vmem:[#allocation5 + $0x10] sm:$0xff] %v213
    %230 = vst [vmem:[#allocation5 + $0x18] sm:$0xff] %v214
    %231 = vst [vmem:[#allocation5 + $0x20] sm:$0xff] %v215
    %232 = vst [vmem:[#allocation5 + $0x28] sm:$0xff] %v216
    %233 = vst [vmem:[#allocation5 + $0x30] sm:$0xff] %v217
    %234 = vst [vmem:[#allocation5 + $0x38] sm:$0xff] %v218
    %235 = vst [vmem:[#allocation5 + $0x40] sm:$0xff] %v219
    %236 = vst [vmem:[#allocation5 + $0x48] sm:$0xff] %v220
    %237 = vst [vmem:[#allocation5 + $0x50] sm:$0xff] %v221
    %238 = vst [vmem:[#allocation5 + $0x58] sm:$0xff] %v222
    %239 = vst [vmem:[#allocation5 + $0x60] sm:$0xff] %v223
    %240 = vst [vmem:[#allocation5 + $0x68] sm:$0xff] %v224
    %241 = vst [vmem:[#allocation5 + $0x70] sm:$0xff] %v225
    %242 = vst [vmem:[#allocation5 + $0x78] sm:$0xff] %v226
    // Predicated region
    $region14: #{tpu_custom_call.1} parent=1 // pred_check
      _
    $region15: #{tpu_custom_call.1} parent=1 // pred_check_branch
      %244 = sbr.rel (0) target = $region17
    $region16: #{tpu_custom_call.1} parent=1 // pred_region
      %s246 = ssub.s32 2048, 2048
      %247 = vsyncadd [#allocation4], %s246
      %s248 = sshll.u32 [#allocation5], 4
      %s249 = int_to_ptr.vmem [resolvable:$true] %s248
      %254 = dma.vmem_to_hbm [thread:$0]  %s249, 2048, %s2, [#allocation4], 256, 256, 16
    $region17: #{tpu_custom_call.1} parent=1 // pred_fallthru
      _
    // Predicated region
    $region18: #{tpu_custom_call.1} parent=1 // pred_check
      _
    $region19: #{tpu_custom_call.1} parent=1 // pred_check_branch
      %256 = sbr.rel (0) target = $region21
    $region20: #{tpu_custom_call.1} parent=1 // pred_region
      %257 = dma.done [#allocation4], 2048
    $region21: #{tpu_custom_call.1} parent=1 // pred_fallthru
      _
    %258 = vsyncpa [#allocation3], 1
    %259 = vsyncpa [#allocation4], 1

</llo_original>
